<compile_context>
chip_gen: v7x
topology: tpu7x:2x2x1
jax: 0.10.0
libtpu: 0.0.40
codegen_flags: <defaults>
</compile_context>

<pallas_src>
import functools
import math

import jax
import jax.numpy as jnp
from jax.experimental import pallas as pl
from jax.experimental.pallas import tpu as pltpu


# ---------------------------------------------------------------------------
# Kernels (shared by the 2D and 3D layouts — broadcasting handles both).
# ---------------------------------------------------------------------------
def _pe_add_kernel(x_ref, pe_ref, o_ref):
    # x_ref: (block_s, B, E) or (block_s, B*E); pe_ref broadcasts over batch.
    o_ref[...] = (x_ref[...] + pe_ref[...]).astype(o_ref.dtype)


def _pe_add_dropout_kernel(x_ref, pe_ref, r_ref, o_ref, *, threshold, scale):
    # Inverted dropout: keep iff r >= threshold (r uniform in [0, 2^31)),
    # keep-prob = 1 - p.  Integer compare only — no int->float convert.
    y = x_ref[...] + pe_ref[...]
    keep = r_ref[...] >= threshold
    o_ref[...] = jnp.where(keep, y * scale, jnp.zeros_like(y)).astype(o_ref.dtype)


# ---------------------------------------------------------------------------
# Sinusoidal table — identical math to the torch __init__ (one-time glue).
# ---------------------------------------------------------------------------
def make_pos_embedding(emb_size: int, maxlen: int = 5000) -> jnp.ndarray:
    den = jnp.exp(-jnp.arange(0, emb_size, 2, dtype=jnp.float32)
                  * math.log(10000.0) / emb_size)
    pos = jnp.arange(0, maxlen, dtype=jnp.float32).reshape(maxlen, 1)
    pe = jnp.zeros((maxlen, emb_size), dtype=jnp.float32)
    pe = pe.at[:, 0::2].set(jnp.sin(pos * den))
    pe = pe.at[:, 1::2].set(jnp.cos(pos * den))
    return pe[:, None, :]                       # (maxlen, 1, emb_size)


# ---------------------------------------------------------------------------
# Forward wrapper.
# ---------------------------------------------------------------------------
def positional_encoding(token_embedding: jnp.ndarray,
                        pos_embedding: jnp.ndarray,
                        *,
                        dropout_p: float = 0.1,
                        training: bool = False,
                        rng_key=None,
                        block_s: int | None = None,
                        donate_input: bool = False) -> jnp.ndarray:
    S, B, E = token_embedding.shape
    assert pos_embedding.shape[0] >= S and pos_embedding.shape[-1] == E
    dtype = token_embedding.dtype
    itemsize = jnp.dtype(dtype).itemsize

    use_dropout = bool(training) and float(dropout_p) > 0.0
    if use_dropout and float(dropout_p) >= 1.0:
        return jnp.zeros_like(token_embedding)

    # --- tile size: ~2 MiB per x/out tile so the BlockSpec pipeline can
    # overlap DMA-in / compute / DMA-out; multiple of 8 rows for sublane
    # density on the folded 2D path.  (Realistic shapes => many grid steps;
    # tiny test shapes collapse to a single full block.)
    row_bytes = B * E * itemsize
    if block_s is None:
        target_tile_bytes = 2 * 1024 * 1024
        block_s = max(8, (target_tile_bytes // max(row_bytes, 1)) // 8 * 8)
        block_s = min(S, block_s)
    grid = (pl.cdiv(S, block_s),)

    # --- dropout bits: generated once in the (S, B, E) logical shape so the
    # mask is identical regardless of layout path / tile size.
    if use_dropout:
        if rng_key is None:
            rng_key = jax.random.PRNGKey(0)
        rbits = (jax.random.bits(rng_key, (S, B, E), jnp.uint32) >> 1
                 ).astype(jnp.int32)                       # uniform [0, 2^31)
        threshold = min(max(int(round(float(dropout_p) * float(2 ** 31))), 0),
                        2 ** 31 - 1)
        scale = 1.0 / (1.0 - float(dropout_p))

    lane_dense_3d = (E % 128 == 0)

    if lane_dense_3d:
        # ---- 3D path: (S, B, E) tiles, lane dim E is a multiple of 128.
        # Full (maxlen, 1, E) table passed; index_map picks row blocks, so no
        # per-call slice of the table.  (If B % 8 != 0 there is some sublane
        # padding, but the kernel stays HBM-bound so it is not the binding
        # slot; a wrapper transpose would cost a full extra HBM pass.)
        pe_full = pos_embedding.astype(dtype)              # (maxlen, 1, E)
        operands = [token_embedding, pe_full]
        in_specs = [
            pl.BlockSpec((block_s, B, E), lambda i: (i, 0, 0)),
            pl.BlockSpec((block_s, 1, E), lambda i: (i, 0, 0)),
        ]
        out_specs = pl.BlockSpec((block_s, B, E), lambda i: (i, 0, 0))
        out_shape = jax.ShapeDtypeStruct((S, B, E), dtype)
        if use_dropout:
            operands.append(rbits)
            in_specs.append(pl.BlockSpec((block_s, B, E), lambda i: (i, 0, 0)))
        reshape_back = None
    else:
        # ---- 2D fold path (small E): free reshape to (S, B*E) puts block_s
        # (multiple of 8) in the sublane position and B*E in the lane
        # position instead of a B=2 / E=32 face.  The PE addend is tiled
        # across batch once in the wrapper (tiny for small E).
        x2 = token_embedding.reshape(S, B * E)
        pe2 = jnp.tile(pos_embedding[:S, 0, :].astype(dtype), (1, B))
        operands = [x2, pe2]
        in_specs = [
            pl.BlockSpec((block_s, B * E), lambda i: (i, 0)),
            pl.BlockSpec((block_s, B * E), lambda i: (i, 0)),
        ]
        out_specs = pl.BlockSpec((block_s, B * E), lambda i: (i, 0))
        out_shape = jax.ShapeDtypeStruct((S, B * E), dtype)
        if use_dropout:
            operands.append(rbits.reshape(S, B * E))
            in_specs.append(pl.BlockSpec((block_s, B * E), lambda i: (i, 0)))
        reshape_back = (S, B, E)

    if use_dropout:
        kernel = functools.partial(_pe_add_dropout_kernel,
                                   threshold=threshold, scale=scale)
    else:
        kernel = _pe_add_kernel

    out = pl.pallas_call(
        kernel,
        out_shape=out_shape,
        grid_spec=pltpu.PrefetchScalarGridSpec(
            num_scalar_prefetch=0,
            grid=grid,
            in_specs=in_specs,
            out_specs=out_specs,
        ),
        # Grid blocks are fully independent (dropout bits are precomputed),
        # so "parallel" lets v7x shard them across its 2 TensorCores.
        compiler_params=pltpu.CompilerParams(
            dimension_semantics=("parallel",),
            vmem_limit_bytes=32 * 1024 * 1024,
        ),
        # Alias x -> out (saves a full-size output allocation) only when the
        # caller explicitly donates the input.
        input_output_aliases={0: 0} if donate_input else {},
    )(*operands)

    if reshape_back is not None:
        out = out.reshape(reshape_back)
    return out


# ---------------------------------------------------------------------------
# Self-test.
# ---------------------------------------------------------------------------
if __name__ == "__main__":
    # --- toy shapes matching the module's convention (S, B, E) -------------
    EMB_SIZE, MAXLEN, SEQ, BATCH, DROPOUT_P = 32, 64, 8, 2, 0.1

    key = jax.random.PRNGKey(0)
    x = jax.random.normal(key, (SEQ, BATCH, EMB_SIZE), dtype=jnp.float32)
    pos_embedding = make_pos_embedding(EMB_SIZE, MAXLEN)

    # Eval mode: dropout is identity — deterministic, checkable.
    out = positional_encoding(x, pos_embedding,
                              dropout_p=DROPOUT_P, training=False)
    out = jax.block_until_ready(out)
    ref = x + pos_embedding[:SEQ]
    assert out.shape == (SEQ, BATCH, EMB_SIZE)
    assert jnp.allclose(out, ref, atol=1e-6, rtol=1e-6), "eval mismatch (2D path)"

    # Training mode: each element must be 0 or ref / (1 - p).
    out_t = positional_encoding(x, pos_embedding, dropout_p=DROPOUT_P,
                                training=True, rng_key=jax.random.PRNGKey(123))
    out_t = jax.block_until_ready(out_t)
    ok = jnp.logical_or(out_t == 0,
                        jnp.isclose(out_t, ref / (1.0 - DROPOUT_P),
                                    atol=1e-5, rtol=1e-5))
    assert bool(jnp.all(ok)), "training mismatch (2D path)"

    # --- also exercise the lane-dense 3D path (E % 128 == 0) ---------------
    E2, M2, S2, B2 = 128, 32, 16, 8
    key2 = jax.random.PRNGKey(1)
    x2 = jax.random.normal(key2, (S2, B2, E2), dtype=jnp.float32)
    pe2 = make_pos_embedding(E2, M2)

    out2 = positional_encoding(x2, pe2, dropout_p=DROPOUT_P, training=False)
    out2 = jax.block_until_ready(out2)
    ref2 = x2 + pe2[:S2]
    assert jnp.allclose(out2, ref2, atol=1e-6, rtol=1e-6), "eval mismatch (3D path)"

    out2_t = positional_encoding(x2, pe2, dropout_p=DROPOUT_P, training=True,
                                 rng_key=jax.random.PRNGKey(7))
    out2_t = jax.block_until_ready(out2_t)
    ok2 = jnp.logical_or(out2_t == 0,
                         jnp.isclose(out2_t, ref2 / (1.0 - DROPOUT_P),
                                     atol=1e-5, rtol=1e-5))
    assert bool(jnp.all(ok2)), "training mismatch (3D path)"

    print("KERNEL_OK")
</pallas_src>

<mosaic_0001>
module attributes {stable_mosaic.version = 11 : i64} {
  func.func @_pe_add_kernel(%arg0: i32, %arg1: memref<8x64xf32, #tpu.memory_space<vmem>>, %arg2: memref<8x64xf32, #tpu.memory_space<vmem>>, %arg3: memref<8x64xf32, #tpu.memory_space<vmem>>) attributes {dimension_semantics = [#tpu.dimension_semantics<parallel>], iteration_bounds = array<i64: 1>, scalar_prefetch = 0 : i64, scratch_operands = 0 : i64, tpu.core_type = #tpu.core_type<tc>, window_params = [{transform_indices = @transform_0, window_bounds = array<i64: 8, 64>}, {transform_indices = @transform_1, window_bounds = array<i64: 8, 64>}, {transform_indices = @transform_2, window_bounds = array<i64: 8, 64>}]} {
    %c0 = arith.constant 0 : index
    %c0_0 = arith.constant 0 : index
    %0 = vector.load %arg1[%c0, %c0_0] : memref<8x64xf32, #tpu.memory_space<vmem>>, vector<8x64xf32>
    %c0_1 = arith.constant 0 : index
    %c0_2 = arith.constant 0 : index
    %1 = vector.load %arg2[%c0_1, %c0_2] : memref<8x64xf32, #tpu.memory_space<vmem>>, vector<8x64xf32>
    %2 = arith.addf %0, %1 : vector<8x64xf32>
    %c0_3 = arith.constant 0 : index
    %c0_4 = arith.constant 0 : index
    %3 = vector.load %arg3[%c0_3, %c0_4] : memref<8x64xf32, #tpu.memory_space<vmem>>, vector<8x64xf32>
    tpu.vector_store %arg3[%c0_3, %c0_4], %2 {strides = array<i32>} : memref<8x64xf32, #tpu.memory_space<vmem>>, vector<8x64xf32>,
    return
  }
  func.func @transform_0(%arg0: i32) -> (i32, i32) {
    %c0_i32 = arith.constant 0 : i32
    %c0_i32_0 = arith.constant 0 : i32
    return %arg0, %c0_i32 : i32, i32
  }
  func.func @transform_1(%arg0: i32) -> (i32, i32) {
    %c0_i32 = arith.constant 0 : i32
    %c0_i32_0 = arith.constant 0 : i32
    return %arg0, %c0_i32 : i32, i32
  }
  func.func @transform_2(%arg0: i32) -> (i32, i32) {
    %c0_i32 = arith.constant 0 : i32
    %c0_i32_0 = arith.constant 0 : i32
    return %arg0, %c0_i32 : i32, i32
  }
}

</mosaic_0001>

<llo_original>
// kernel: tpu_custom_call.1
$region0: #{tpu_custom_call.1}
  #allocation0 [shape = 'u32[]', space=smem, size = 0x4, offset = 0x4, fixed_abs, tag = 'smem constant byte address 0x4 - core index']
  #allocation1 [shape = 'u32[144,128]{1,0:T(1,128)}', space=vmem, size = 0x12000, scoped, tag = 'internal scratch']
  %s0 = inlined_call_operand.hbm [shape: f32[8,64], index: 0, kind: input, shape index: {}]
  %s1 = inlined_call_operand.hbm [shape: f32[8,64], index: 1, kind: input, shape index: {}]
  %s2 = inlined_call_operand.hbm [shape: f32[8,64], index: 2, kind: output, shape index: {}]
  %s3 = sld [smem:[#allocation0]]
  $region26: #{tpu_custom_call.1} parent=0
    _
  %s5 = ssub.s32 1, %s3
  %s6 = scalar_select 0, %s5, %s3
  $region1: #{tpu_custom_call.1} parent=0
    #allocation2 [shape = 'u8[4096]{0}', space=vmem, size = 0x1000, scoped, tag = 'input window, operand 0, single buffered']
    #allocation3 [shape = 's32[1]{0}', space=sflag, size = 0x4, scoped, tag = 'scoped memory for tpu_custom_call.1']
    #allocation4 [shape = 's32[1]{0}', space=sflag, size = 0x4, scoped, tag = 'scoped memory for tpu_custom_call.1']
    #allocation5 [shape = 'u8[4096]{0}', space=vmem, size = 0x1000, scoped, tag = 'input window, operand 1, single buffered']
    #allocation6 [shape = 's32[1]{0}', space=sflag, size = 0x4, scoped, tag = 'scoped memory for tpu_custom_call.1']
    #allocation7 [shape = 'u8[4096]{0}', space=vmem, size = 0x1000, scoped, tag = 'output window, operand 0, single buffered']
    %7 = vsyncpa [#allocation3], 0
    %8 = vsyncpa [#allocation6], 0
    %9 = vsyncpa [#allocation4], 0
    // Predicated region
    $region2: #{tpu_custom_call.1} parent=1 // pred_check
      _
    $region3: #{tpu_custom_call.1} parent=1 // pred_check_branch
      %11 = sbr.rel (0) target = $region5
    $region4: #{tpu_custom_call.1} parent=1 // pred_region
      %s13 = ssub.s32 128, 128
      %14 = vsyncadd [#allocation3], %s13
      %s16 = sshll.u32 [#allocation2], 4
      %s17 = int_to_ptr.vmem [resolvable:$true] %s16
      %19 = dma.hbm_to_vmem [thread:$0]  %s0, 128, %s17, [#allocation3]
    $region5: #{tpu_custom_call.1} parent=1 // pred_fallthru
      _
    // Predicated region
    $region6: #{tpu_custom_call.1} parent=1 // pred_check
      _
    $region7: #{tpu_custom_call.1} parent=1 // pred_check_branch
      %21 = sbr.rel (0) target = $region9
    $region8: #{tpu_custom_call.1} parent=1 // pred_region
      %s23 = ssub.s32 128, 128
      %24 = vsyncadd [#allocation6], %s23
      %s26 = sshll.u32 [#allocation5], 4
      %s27 = int_to_ptr.vmem [resolvable:$true] %s26
      %29 = dma.hbm_to_vmem [thread:$0]  %s1, 128, %s27, [#allocation6]
    $region9: #{tpu_custom_call.1} parent=1 // pred_fallthru
      _
    // Predicated region
    $region10: #{tpu_custom_call.1} parent=1 // pred_check
      _
    $region11: #{tpu_custom_call.1} parent=1 // pred_check_branch
      %31 = sbr.rel (0) target = $region13
    $region12: #{tpu_custom_call.1} parent=1 // pred_region
      %32 = dma.done [#allocation3], 128
    $region13: #{tpu_custom_call.1} parent=1 // pred_fallthru
      _
    // Predicated region
    $region14: #{tpu_custom_call.1} parent=1 // pred_check
      _
    $region15: #{tpu_custom_call.1} parent=1 // pred_check_branch
      %34 = sbr.rel (0) target = $region17
    $region16: #{tpu_custom_call.1} parent=1 // pred_region
      %35 = dma.done [#allocation6], 128
    $region17: #{tpu_custom_call.1} parent=1 // pred_fallthru
      _
    %v36 = vld [vmem:[#allocation2] sm:$0xff]
    %v37 = vld [vmem:[#allocation5] sm:$0xff]
    %v38 = vadd.f32 %v36, %v37
    %vm39 = vcmask 523264
    %40 = vst.msk [vmem:[#allocation7] sm:$0xff] %vm39, %v38
    // Predicated region
    $region18: #{tpu_custom_call.1} parent=1 // pred_check
      _
    $region19: #{tpu_custom_call.1} parent=1 // pred_check_branch
      %42 = sbr.rel (0) target = $region21
    $region20: #{tpu_custom_call.1} parent=1 // pred_region
      %s44 = ssub.s32 128, 128
      %45 = vsyncadd [#allocation4], %s44
      %s47 = sshll.u32 [#allocation7], 4
      %s48 = int_to_ptr.vmem [resolvable:$true] %s47
      %50 = dma.vmem_to_hbm [thread:$0]  %s48, 128, %s2, [#allocation4]
    $region21: #{tpu_custom_call.1} parent=1 // pred_fallthru
      _
    // Predicated region
    $region22: #{tpu_custom_call.1} parent=1 // pred_check
      _
    $region23: #{tpu_custom_call.1} parent=1 // pred_check_branch
      %52 = sbr.rel (0) target = $region25
    $region24: #{tpu_custom_call.1} parent=1 // pred_region
      %53 = dma.done [#allocation4], 128
    $region25: #{tpu_custom_call.1} parent=1 // pred_fallthru
      _
    %54 = vsyncpa [#allocation3], 1
    %55 = vsyncpa [#allocation6], 1
    %56 = vsyncpa [#allocation4], 1

</llo_original>
